<compile_context>
chip_gen: v6e
topology: v6e:2x2x1
jax: 0.10.0
libtpu: 0.0.40
codegen_flags: <defaults>
</compile_context>

<pallas_src>
import jax
import jax.numpy as jnp
from jax.experimental import pallas as pl
from jax.experimental.pallas import tpu as pltpu

_SUBLANE = 8  # f32 sublane count (second-to-last dim granularity)


def _round_up(x, m):
    return ((x + m - 1) // m) * m


def _vmem_capacity_bytes():
    """Per-generation VMEM capacity (v5e/v6e: 128 MiB, v7x: 64 MiB)."""
    try:
        info = pltpu.get_tpu_info()
        cap = getattr(info, "vmem_capacity_bytes", None)
        if cap:
            return int(cap)
    except Exception:
        pass
    return 64 << 20  # conservative (v7x) fallback


def _choose_batch_tiling(b8, max_block=1024):
    """Pick (block_batch, Bp).

    Goals: block multiple of 8, <= max_block, >=2 grid steps whenever b8 >= 16
    (keeps both v7x TensorCores busy), and minimal padding Bp - b8 for ragged
    batches (e.g. b8=304 -> block=152, Bp=304 rather than 128 -> Bp=384).
    """
    if b8 <= _SUBLANE:
        return b8, b8
    steps = max(2, -(-b8 // max_block))          # ceil division
    block = _round_up(-(-b8 // steps), _SUBLANE)  # ceil, then sublane-align
    bp = block * steps
    return block, bp


def _make_mlp_kernel(n_layers):
    """Fused MLP kernel: h = ReLU(h @ W_i + b_i) for all but the last layer."""

    def kernel(*refs):
        x_ref = refs[0]
        o_ref = refs[-1]
        param_refs = refs[1:-1]  # w0, b0, w1, b1, ...
        h = x_ref[...]  # compute_dtype operands feed the MXU directly
        for i in range(n_layers):
            w = param_refs[2 * i][...]
            b = param_refs[2 * i + 1][...]                       # f32 bias (1, out)
            acc = jnp.dot(h, w, preferred_element_type=jnp.float32) + b
            if i < n_layers - 1:
                acc = jnp.maximum(acc, 0.0)                      # ReLU; dropout == identity
                h = acc.astype(w.dtype)                          # back to MXU dtype
            else:
                h = acc                                          # final layer stays f32
        o_ref[...] = h.astype(o_ref.dtype)

    return kernel


def prepare_params(params, compute_dtype=jnp.bfloat16):
    """One-time parameter prep (hoisted out of the per-call wrapper).

    Args:
      params: list of (W, b) with W of shape (out, in) (PyTorch convention), b (out,).
      compute_dtype: MXU operand dtype (jnp.bfloat16 default; jnp.float32 escape hatch).
    Returns:
      tuple of arrays (w0, b0, w1, b1, ...) with w_i of shape (in, out) in
      compute_dtype and b_i of shape (1, out) in f32.
    """
    flat = []
    for w, b in params:
        w_t = jnp.asarray(w, jnp.float32).T.astype(compute_dtype)   # (in, out): h @ W_t + b
        b_r = jnp.asarray(b, jnp.float32).reshape(1, -1)
        flat += [w_t, b_r]
    return tuple(flat)


def deep_nn_forward(x, flat_params, *, block_batch=None, max_block=1024):
    """Fused MLP forward in one Pallas kernel.

    Args:
      x: (B, D_in) float32 input.
      flat_params: output of prepare_params().
    Returns:
      (B, D_out) float32 output.
    """
    B, d_in = x.shape
    n_layers = len(flat_params) // 2
    dims = [flat_params[0].shape[0]] + [flat_params[2 * i].shape[1] for i in range(n_layers)]
    assert dims[0] == d_in
    d_out = dims[-1]
    compute_dtype = flat_params[0].dtype
    comp_itemsize = jnp.dtype(compute_dtype).itemsize

    # Batch padding + tile selection (multiple of 8 sublanes, minimal waste).
    b8 = _round_up(B, _SUBLANE)
    if block_batch is None:
        block_batch, Bp = _choose_batch_tiling(b8, max_block=max_block)
    else:
        block_batch = _round_up(block_batch, _SUBLANE)
        Bp = _round_up(b8, block_batch)
    grid = (Bp // block_batch,)

    # Input stays at its true feature width (no lane padding of HBM streams);
    # only the batch axis is zero-padded.  Padded rows are sliced off at the end.
    x_c = jnp.asarray(x, jnp.float32).astype(compute_dtype)
    x_p = jnp.pad(x_c, ((0, Bp - B), (0, 0))) if Bp != B else x_c

    # BlockSpecs: tile over batch only; parameters fully resident (constant index_map).
    # Last block dims (d_in / d_out / per-layer widths) equal the full array dims -> legal.
    in_specs = [pl.BlockSpec((block_batch, d_in), lambda i: (i, 0))]
    for p in flat_params:
        in_specs.append(pl.BlockSpec(p.shape, lambda i: (0, 0)))
    out_spec = pl.BlockSpec((block_batch, d_out), lambda i: (i, 0))

    # VMEM budget: double-buffered x/out tiles + resident params + activation headroom;
    # clamp generation-aware (128 MiB on v5e/v6e, 64 MiB on v7x).
    param_bytes = sum(int(p.size) * p.dtype.itemsize for p in flat_params)
    tile_bytes = block_batch * (d_in * comp_itemsize + d_out * 4)
    act_bytes = 4 * block_batch * max(dims) * 4
    vmem_est = 2 * tile_bytes + 2 * param_bytes + act_bytes
    vmem_limit = int(min(max(2 * vmem_est, 16 << 20), _vmem_capacity_bytes()))

    flops = 2 * Bp * sum(dims[i] * dims[i + 1] for i in range(n_layers))
    bytes_accessed = int(Bp * d_in * comp_itemsize + param_bytes + Bp * d_out * 4)

    out = pl.pallas_call(
        _make_mlp_kernel(n_layers),
        out_shape=jax.ShapeDtypeStruct((Bp, d_out), jnp.float32),
        grid_spec=pltpu.PrefetchScalarGridSpec(
            num_scalar_prefetch=0,
            grid=grid,
            in_specs=in_specs,
            out_specs=out_spec,
        ),
        compiler_params=pltpu.CompilerParams(
            dimension_semantics=("parallel",),
            vmem_limit_bytes=vmem_limit,
        ),
        cost_estimate=pl.CostEstimate(
            flops=flops, transcendentals=0, bytes_accessed=bytes_accessed),
    )(x_p, *flat_params)

    return out[:B] if Bp != B else out


def init_params(node_list, key):
    """Deterministic init matching nn.Linear shapes: W (out, in), b (out,)."""
    params = []
    for i in range(len(node_list) - 1):
        fan_in, fan_out = node_list[i], node_list[i + 1]
        key, kw, kb = jax.random.split(key, 3)
        bound = 1.0 / jnp.sqrt(jnp.float32(fan_in))
        w = jax.random.uniform(kw, (fan_out, fan_in), jnp.float32, -bound, bound)
        b = jax.random.uniform(kb, (fan_out,), jnp.float32, -bound, bound)
        params.append((w, b))
    return params


def reference_forward(x, params):
    """Pure-JAX f32 reference mirroring the PyTorch forward (eval-mode dropout)."""
    h = x
    n = len(params)
    for i, (w, b) in enumerate(params):
        h = h @ w.T + b
        if i < n - 1:
            h = jnp.maximum(h, 0.0)
    return h


if __name__ == "__main__":
    # arg = {'node_list': [32, 64, 64, 16], 'dropout': 0.1}
    node_list = [32, 64, 64, 16]

    key = jax.random.PRNGKey(0)
    params = init_params(node_list, key)

    # One-time parameter preparation (transpose + bf16 cast), hoisted out of the call path.
    flat_params = prepare_params(params, compute_dtype=jnp.bfloat16)

    # Case 1: small batch (single grid step).
    key, kx = jax.random.split(key)
    x_small = jax.random.normal(kx, (8, node_list[0]), jnp.float32)
    out_small = jax.block_until_ready(deep_nn_forward(x_small, flat_params))
    ref_small = reference_forward(x_small, params)
    assert out_small.shape == (8, node_list[-1])
    assert jnp.allclose(out_small, ref_small, atol=5e-2, rtol=5e-2), "small-batch mismatch"

    # Case 2: larger, non-tile-aligned batch (exercises minimal batch padding: Bp=304, grid=2).
    key, kx2 = jax.random.split(key)
    x_big = jax.random.normal(kx2, (300, node_list[0]), jnp.float32)
    out_big = jax.block_until_ready(deep_nn_forward(x_big, flat_params))
    ref_big = reference_forward(x_big, params)
    assert out_big.shape == (300, node_list[-1])
    assert jnp.allclose(out_big, ref_big, atol=5e-2, rtol=5e-2), "big-batch mismatch"

    # Case 3: larger aligned batch (multi-step grid with bigger tiles).
    key, kx3 = jax.random.split(key)
    x_large = jax.random.normal(kx3, (2048, node_list[0]), jnp.float32)
    out_large = jax.block_until_ready(deep_nn_forward(x_large, flat_params))
    ref_large = reference_forward(x_large, params)
    assert out_large.shape == (2048, node_list[-1])
    assert jnp.allclose(out_large, ref_large, atol=5e-2, rtol=5e-2), "large-batch mismatch"

    print("KERNEL_OK")
</pallas_src>

<mosaic_0001>
module attributes {stable_mosaic.version = 11 : i64} {
  func.func @kernel(%arg0: i32, %arg1: memref<8x32xbf16, #tpu.memory_space<vmem>>, %arg2: memref<32x64xbf16, #tpu.memory_space<vmem>>, %arg3: memref<1x64xf32, #tpu.memory_space<vmem>>, %arg4: memref<64x64xbf16, #tpu.memory_space<vmem>>, %arg5: memref<1x64xf32, #tpu.memory_space<vmem>>, %arg6: memref<64x16xbf16, #tpu.memory_space<vmem>>, %arg7: memref<1x16xf32, #tpu.memory_space<vmem>>, %arg8: memref<8x16xf32, #tpu.memory_space<vmem>>) attributes {dimension_semantics = [#tpu.dimension_semantics<parallel>], iteration_bounds = array<i64: 1>, scalar_prefetch = 0 : i64, scratch_operands = 0 : i64, tpu.core_type = #tpu.core_type<tc>, window_params = [{transform_indices = @transform_0, window_bounds = array<i64: 8, 32>}, {pipeline_mode = #tpu.pipeline_mode<synchronous>, transform_indices = @transform_1, window_bounds = array<i64: 32, 64>}, {pipeline_mode = #tpu.pipeline_mode<synchronous>, transform_indices = @transform_2, window_bounds = array<i64: 1, 64>}, {pipeline_mode = #tpu.pipeline_mode<synchronous>, transform_indices = @transform_3, window_bounds = array<i64: 64, 64>}, {pipeline_mode = #tpu.pipeline_mode<synchronous>, transform_indices = @transform_4, window_bounds = array<i64: 1, 64>}, {pipeline_mode = #tpu.pipeline_mode<synchronous>, transform_indices = @transform_5, window_bounds = array<i64: 64, 16>}, {pipeline_mode = #tpu.pipeline_mode<synchronous>, transform_indices = @transform_6, window_bounds = array<i64: 1, 16>}, {transform_indices = @transform_7, window_bounds = array<i64: 8, 16>}]} {
    %c0 = arith.constant 0 : index
    %c0_0 = arith.constant 0 : index
    %0 = vector.load %arg1[%c0, %c0_0] : memref<8x32xbf16, #tpu.memory_space<vmem>>, vector<8x32xbf16>
    %c0_1 = arith.constant 0 : index
    %c0_2 = arith.constant 0 : index
    %1 = vector.load %arg2[%c0_1, %c0_2] : memref<32x64xbf16, #tpu.memory_space<vmem>>, vector<32x64xbf16>
    %c0_3 = arith.constant 0 : index
    %c0_4 = arith.constant 0 : index
    %2 = vector.load %arg3[%c0_3, %c0_4] : memref<1x64xf32, #tpu.memory_space<vmem>>, vector<1x64xf32>
    %cst = arith.constant dense<0.000000e+00> : vector<8x64xf32>
    %3 = tpu.matmul %0, %1, %cst {dimension_numbers = #tpu.dot_dimension_numbers<[1], [0], [0], [1], [0, 0, 1, 1], [], []>} : vector<8x32xbf16>, vector<32x64xbf16>, vector<8x64xf32> -> vector<8x64xf32>
    %4 = vector.broadcast %2 : vector<1x64xf32> to vector<8x64xf32>
    %5 = arith.addf %3, %4 : vector<8x64xf32>
    %cst_5 = arith.constant 0.000000e+00 : f32
    %6 = vector.broadcast %cst_5 : f32 to vector<8x64xf32>
    %7 = arith.maximumf %5, %6 : vector<8x64xf32>
    %8 = arith.truncf %7 : vector<8x64xf32> to vector<8x64xbf16>
    %c0_6 = arith.constant 0 : index
    %c0_7 = arith.constant 0 : index
    %9 = vector.load %arg4[%c0_6, %c0_7] : memref<64x64xbf16, #tpu.memory_space<vmem>>, vector<64x64xbf16>
    %c0_8 = arith.constant 0 : index
    %c0_9 = arith.constant 0 : index
    %10 = vector.load %arg5[%c0_8, %c0_9] : memref<1x64xf32, #tpu.memory_space<vmem>>, vector<1x64xf32>
    %cst_10 = arith.constant dense<0.000000e+00> : vector<8x64xf32>
    %11 = tpu.matmul %8, %9, %cst_10 {dimension_numbers = #tpu.dot_dimension_numbers<[1], [0], [0], [1], [0, 0, 1, 1], [], []>} : vector<8x64xbf16>, vector<64x64xbf16>, vector<8x64xf32> -> vector<8x64xf32>
    %12 = vector.broadcast %10 : vector<1x64xf32> to vector<8x64xf32>
    %13 = arith.addf %11, %12 : vector<8x64xf32>
    %cst_11 = arith.constant 0.000000e+00 : f32
    %14 = vector.broadcast %cst_11 : f32 to vector<8x64xf32>
    %15 = arith.maximumf %13, %14 : vector<8x64xf32>
    %16 = arith.truncf %15 : vector<8x64xf32> to vector<8x64xbf16>
    %c0_12 = arith.constant 0 : index
    %c0_13 = arith.constant 0 : index
    %17 = vector.load %arg6[%c0_12, %c0_13] : memref<64x16xbf16, #tpu.memory_space<vmem>>, vector<64x16xbf16>
    %c0_14 = arith.constant 0 : index
    %c0_15 = arith.constant 0 : index
    %18 = vector.load %arg7[%c0_14, %c0_15] : memref<1x16xf32, #tpu.memory_space<vmem>>, vector<1x16xf32>
    %cst_16 = arith.constant dense<0.000000e+00> : vector<8x16xf32>
    %19 = tpu.matmul %16, %17, %cst_16 {dimension_numbers = #tpu.dot_dimension_numbers<[1], [0], [0], [1], [0, 0, 1, 1], [], []>} : vector<8x64xbf16>, vector<64x16xbf16>, vector<8x16xf32> -> vector<8x16xf32>
    %20 = vector.broadcast %18 : vector<1x16xf32> to vector<8x16xf32>
    %21 = arith.addf %19, %20 : vector<8x16xf32>
    %c0_17 = arith.constant 0 : index
    %c0_18 = arith.constant 0 : index
    %22 = vector.load %arg8[%c0_17, %c0_18] : memref<8x16xf32, #tpu.memory_space<vmem>>, vector<8x16xf32>
    tpu.vector_store %arg8[%c0_17, %c0_18], %21 {strides = array<i32>} : memref<8x16xf32, #tpu.memory_space<vmem>>, vector<8x16xf32>,
    return
  }
  func.func @transform_0(%arg0: i32) -> (i32, i32) {
    %c0_i32 = arith.constant 0 : i32
    %c0_i32_0 = arith.constant 0 : i32
    return %arg0, %c0_i32 : i32, i32
  }
  func.func @transform_1(%arg0: i32) -> (i32, i32) {
    %c0_i32 = arith.constant 0 : i32
    %c0_i32_0 = arith.constant 0 : i32
    %c0_i32_1 = arith.constant 0 : i32
    return %c0_i32, %c0_i32_0 : i32, i32
  }
  func.func @transform_2(%arg0: i32) -> (i32, i32) {
    %c0_i32 = arith.constant 0 : i32
    %c0_i32_0 = arith.constant 0 : i32
    %c0_i32_1 = arith.constant 0 : i32
    return %c0_i32, %c0_i32_0 : i32, i32
  }
  func.func @transform_3(%arg0: i32) -> (i32, i32) {
    %c0_i32 = arith.constant 0 : i32
    %c0_i32_0 = arith.constant 0 : i32
    %c0_i32_1 = arith.constant 0 : i32
    return %c0_i32, %c0_i32_0 : i32, i32
  }
  func.func @transform_4(%arg0: i32) -> (i32, i32) {
    %c0_i32 = arith.constant 0 : i32
    %c0_i32_0 = arith.constant 0 : i32
    %c0_i32_1 = arith.constant 0 : i32
    return %c0_i32, %c0_i32_0 : i32, i32
  }
  func.func @transform_5(%arg0: i32) -> (i32, i32) {
    %c0_i32 = arith.constant 0 : i32
    %c0_i32_0 = arith.constant 0 : i32
    %c0_i32_1 = arith.constant 0 : i32
    return %c0_i32, %c0_i32_0 : i32, i32
  }
  func.func @transform_6(%arg0: i32) -> (i32, i32) {
    %c0_i32 = arith.constant 0 : i32
    %c0_i32_0 = arith.constant 0 : i32
    %c0_i32_1 = arith.constant 0 : i32
    return %c0_i32, %c0_i32_0 : i32, i32
  }
  func.func @transform_7(%arg0: i32) -> (i32, i32) {
    %c0_i32 = arith.constant 0 : i32
    %c0_i32_0 = arith.constant 0 : i32
    return %arg0, %c0_i32 : i32, i32
  }
}

</mosaic_0001>

<llo_original>
// kernel: tpu_custom_call.1
$region0: #{tpu_custom_call.1}
  #allocation0 [shape = 'u32[]', space=smem, size = 0x4, offset = 0x4, fixed_abs, tag = 'smem constant byte address 0x4 - core index']
  #allocation1 [shape = 'u32[144,128]{1,0:T(1,128)}', space=vmem, size = 0x12000, scoped, tag = 'internal scratch']
  %s0 = inlined_call_operand.vmem [shape: bf16[8,32], index: 0, kind: input, shape index: {}]
  %s1 = inlined_call_operand.hbm [shape: bf16[32,64], index: 1, kind: input, shape index: {}]
  %s2 = inlined_call_operand.vmem [shape: f32[1,64], index: 2, kind: input, shape index: {}]
  %s3 = inlined_call_operand.vmem [shape: bf16[64,64], index: 3, kind: input, shape index: {}]
  %s4 = inlined_call_operand.vmem [shape: f32[1,64], index: 4, kind: input, shape index: {}]
  %s5 = inlined_call_operand.vmem [shape: bf16[64,16], index: 5, kind: input, shape index: {}]
  %s6 = inlined_call_operand.vmem [shape: f32[1,16], index: 6, kind: input, shape index: {}]
  %s7 = inlined_call_operand.hbm [shape: f32[8,16], index: 7, kind: output, shape index: {}]
  %s8 = sld [smem:[#allocation0]]
  $region42: #{tpu_custom_call.1} parent=0
    _
  %s10 = ssub.s32 1, %s8
  %s11 = scalar_select 0, %s10, %s8
  $region1: #{tpu_custom_call.1} parent=0
    #allocation2 [shape = 'u8[8192]{0}', space=vmem, size = 0x2000, scoped, tag = 'input window, operand 1, single buffered']
    #allocation3 [shape = 's32[1]{0}', space=sflag, size = 0x4, scoped, tag = 'scoped memory for tpu_custom_call.1']
    #allocation4 [shape = 's32[1]{0}', space=sflag, size = 0x4, scoped, tag = 'scoped memory for tpu_custom_call.1']
    #allocation5 [shape = 'u8[4096]{0}', space=vmem, size = 0x1000, scoped, tag = 'output window, operand 0, single buffered']
    %12 = vsyncpa [#allocation3], 0
    %13 = vsyncpa [#allocation4], 0
    // Predicated region
    $region2: #{tpu_custom_call.1} parent=1 // pred_check
      _
    $region3: #{tpu_custom_call.1} parent=1 // pred_check_branch
      %15 = sbr.rel (0) target = $region5
    $region4: #{tpu_custom_call.1} parent=1 // pred_region
      _
    $region5: #{tpu_custom_call.1} parent=1 // pred_fallthru
      _
    // Predicated region
    $region6: #{tpu_custom_call.1} parent=1 // pred_check
      _
    $region7: #{tpu_custom_call.1} parent=1 // pred_check_branch
      %17 = sbr.rel (0) target = $region9
    $region8: #{tpu_custom_call.1} parent=1 // pred_region
      %s19 = ssub.s32 256, 256
      %20 = vsyncadd [#allocation3], %s19
      %s21 = sshll.u32 [#allocation2], 4
      %s22 = int_to_ptr.vmem [resolvable:$true] %s21
      %27 = dma.hbm_to_vmem [thread:$0]  %s1, 256, %s22, [#allocation3], 64, 64, 4
    $region9: #{tpu_custom_call.1} parent=1 // pred_fallthru
      _
    // Predicated region
    $region10: #{tpu_custom_call.1} parent=1 // pred_check
      _
    $region11: #{tpu_custom_call.1} parent=1 // pred_check_branch
      %29 = sbr.rel (0) target = $region13
    $region12: #{tpu_custom_call.1} parent=1 // pred_region
      _
    $region13: #{tpu_custom_call.1} parent=1 // pred_fallthru
      _
    // Predicated region
    $region14: #{tpu_custom_call.1} parent=1 // pred_check
      _
    $region15: #{tpu_custom_call.1} parent=1 // pred_check_branch
      %31 = sbr.rel (0) target = $region17
    $region16: #{tpu_custom_call.1} parent=1 // pred_region
      _
    $region17: #{tpu_custom_call.1} parent=1 // pred_fallthru
      _
    // Predicated region
    $region18: #{tpu_custom_call.1} parent=1 // pred_check
      _
    $region19: #{tpu_custom_call.1} parent=1 // pred_check_branch
      %33 = sbr.rel (0) target = $region21
    $region20: #{tpu_custom_call.1} parent=1 // pred_region
      _
    $region21: #{tpu_custom_call.1} parent=1 // pred_fallthru
      _
    // Predicated region
    $region22: #{tpu_custom_call.1} parent=1 // pred_check
      _
    $region23: #{tpu_custom_call.1} parent=1 // pred_check_branch
      %35 = sbr.rel (0) target = $region25
    $region24: #{tpu_custom_call.1} parent=1 // pred_region
      _
    $region25: #{tpu_custom_call.1} parent=1 // pred_fallthru
      _
    // Predicated region
    $region26: #{tpu_custom_call.1} parent=1 // pred_check
      _
    $region27: #{tpu_custom_call.1} parent=1 // pred_check_branch
      %37 = sbr.rel (0) target = $region29
    $region28: #{tpu_custom_call.1} parent=1 // pred_region
      _
    $region29: #{tpu_custom_call.1} parent=1 // pred_fallthru
      _
    // Predicated region
    $region30: #{tpu_custom_call.1} parent=1 // pred_check
      _
    $region31: #{tpu_custom_call.1} parent=1 // pred_check_branch
      %39 = sbr.rel (0) target = $region33
    $region32: #{tpu_custom_call.1} parent=1 // pred_region
      %40 = dma.done [#allocation3], 256
    $region33: #{tpu_custom_call.1} parent=1 // pred_fallthru
      _
    %v42 = vld [vmem:[%s0] sm:$0xf]
    %v43 = vld [vmem:[#allocation2] sm:$0xf]
    %v44 = vld [vmem:[#allocation2 + $0x4] sm:$0xf]
    %v45 = vld [vmem:[#allocation2 + $0x8] sm:$0xf]
    %v46 = vld [vmem:[#allocation2 + $0xc] sm:$0xf]
    %v47 = vld [vmem:[%s2] sm:$0x1]
    %v49 = vlaneseq
    %v50 = vshrl.u32 %v49, 7
    %v51 = vsub.s32 0, %v50
    %v52 = vrot.slane %v47, %v51
    %v58 = vunpack.c.l.b16 %v43
    %v59 = vunpack.c.l.b16 %v44
    %v60 = vunpack.c.l.b16 %v45
    %v61 = vunpack.c.l.b16 %v46
    %v62 = vpack.c.b16 %v59, %v58
    %v63 = vpack.c.b16 %v61, %v60
    %vm66 = vcmask 261120
    %v68 = vsel %vm66, %v42, 0
    %70 = vmatprep.subr.bf16.mxu0 0
    %71 = vmatpush1.bf16.msra.mxu0 0
    %72 = vmatprep.subr.bf16.mxu0 0
    %73 = vmatpush1.bf16.msra.mxu0 0
    %74 = vmatprep.subr.bf16.mxu0 0
    %75 = vmatpush1.bf16.msra.mxu0 0
    %76 = vmatprep.subr.bf16.mxu0 0
    %77 = vmatpush1.bf16.msra.mxu0 0
    %78 = vmatprep.subr.bf16.mxu0 0
    %79 = vmatpush1.bf16.msra.mxu0 0
    %80 = vmatprep.subr.bf16.mxu0 0
    %81 = vmatpush1.bf16.msra.mxu0 0
    %82 = vmatprep.subr.bf16.mxu0 0
    %83 = vmatpush1.bf16.msra.mxu0 %v63
    %84 = vmatprep.subr.bf16.mxu0 0
    %85 = vmatpush1.bf16.msra.mxu0 %v62
    %86 = vmatprep.subr.bf16.mxu0 0
    %87 = vmatpush2.bf16.msra.mxu0 0
    %88 = vmatprep.subr.bf16.mxu0 0
    %89 = vmatpush2.bf16.msra.mxu0 0
    %90 = vmatprep.subr.bf16.mxu0 0
    %91 = vmatpush2.bf16.msra.mxu0 0
    %92 = vmatprep.subr.bf16.mxu0 0
    %93 = vmatpush2.bf16.msra.mxu0 0
    %94 = vmatprep.subr.bf16.mxu0 0
    %95 = vmatpush2.bf16.msra.mxu0 0
    %96 = vmatprep.subr.bf16.mxu0 0
    %97 = vmatpush2.bf16.msra.mxu0 0
    %98 = vmatprep.subr.bf16.mxu0 0
    %99 = vmatpush2.bf16.msra.mxu0 0
    %100 = vmatprep.subr.bf16.mxu0 0
    %101 = vmatpush2.bf16.msra.mxu0 0
    %102 = vmatprep.mubr.bf16.mxu0 0
    %103 = vmatmul.mubr.bf16.gmra.mxu0 %v68
    %v104 = vpop.f32.mrf.mxu0
    %v105 = vadd.f32 %v52, %v104
    %v106 = vpop.f32.mrf.mxu0
    %v107 = vpop.f32.mrf.mxu0
    %v108 = vpop.f32.mrf.mxu0
    %109 = vdwg.mxu0
    %v110 = vmax.f32 %v105, 0.0
    %v111 = vpack.c.bf16 %v110, %v110
    %v112 = vld [vmem:[%s3] sm:$0xf]
    %v113 = vld [vmem:[%s3 + $0x4] sm:$0xf]
    %v114 = vld [vmem:[%s3 + $0x8] sm:$0xf]
    %v115 = vld [vmem:[%s3 + $0xc] sm:$0xf]
    %v116 = vld [vmem:[%s3 + $0x10] sm:$0xf]
    %v117 = vld [vmem:[%s3 + $0x14] sm:$0xf]
    %v118 = vld [vmem:[%s3 + $0x18] sm:$0xf]
    %v119 = vld [vmem:[%s3 + $0x1c] sm:$0xf]
    %v120 = vld [vmem:[%s4] sm:$0x1]
    %v122 = vlaneseq
    %v123 = vshrl.u32 %v122, 7
    %v124 = vsub.s32 0, %v123
    %v125 = vrot.slane %v120, %v124
    %v135 = vunpack.c.l.b16 %v112
    %v136 = vunpack.c.l.b16 %v113
    %v137 = vunpack.c.l.b16 %v114
    %v138 = vunpack.c.l.b16 %v115
    %v139 = vunpack.c.l.b16 %v116
    %v140 = vunpack.c.l.b16 %v117
    %v141 = vunpack.c.l.b16 %v118
    %v142 = vunpack.c.l.b16 %v119
    %v143 = vpack.c.b16 %v136, %v135
    %v144 = vpack.c.b16 %v138, %v137
    %v145 = vpack.c.b16 %v140, %v139
    %v146 = vpack.c.b16 %v142, %v141
    %vm151 = vcmask 523264
    %v153 = vsel %vm151, %v111, 0
    %155 = vmatprep.subr.bf16.mxu0 0
    %156 = vmatpush1.bf16.msra.mxu0 0
    %157 = vmatprep.subr.bf16.mxu0 0
    %158 = vmatpush1.bf16.msra.mxu0 0
    %159 = vmatprep.subr.bf16.mxu0 0
    %160 = vmatpush1.bf16.msra.mxu0 0
    %161 = vmatprep.subr.bf16.mxu0 0
    %162 = vmatpush1.bf16.msra.mxu0 0
    %163 = vmatprep.subr.bf16.mxu0 0
    %164 = vmatpush1.bf16.msra.mxu0 %v146
    %165 = vmatprep.subr.bf16.mxu0 0
    %166 = vmatpush1.bf16.msra.mxu0 %v145
    %167 = vmatprep.subr.bf16.mxu0 0
    %168 = vmatpush1.bf16.msra.mxu0 %v144
    %169 = vmatprep.subr.bf16.mxu0 0
    %170 = vmatpush1.bf16.msra.mxu0 %v143
    %171 = vmatprep.subr.bf16.mxu0 0
    %172 = vmatpush2.bf16.msra.mxu0 0
    %173 = vmatprep.subr.bf16.mxu0 0
    %174 = vmatpush2.bf16.msra.mxu0 0
    %175 = vmatprep.subr.bf16.mxu0 0
    %176 = vmatpush2.bf16.msra.mxu0 0
    %177 = vmatprep.subr.bf16.mxu0 0
    %178 = vmatpush2.bf16.msra.mxu0 0
    %179 = vmatprep.subr.bf16.mxu0 0
    %180 = vmatpush2.bf16.msra.mxu0 0
    %181 = vmatprep.subr.bf16.mxu0 0
    %182 = vmatpush2.bf16.msra.mxu0 0
    %183 = vmatprep.subr.bf16.mxu0 0
    %184 = vmatpush2.bf16.msra.mxu0 0
    %185 = vmatprep.subr.bf16.mxu0 0
    %186 = vmatpush2.bf16.msra.mxu0 0
    %187 = vmatprep.mubr.bf16.mxu0 0
    %188 = vmatmul.mubr.bf16.gmra.mxu0 %v153
    %v189 = vpop.f32.mrf.mxu0
    %v190 = vadd.f32 %v125, %v189
    %v191 = vpop.f32.mrf.mxu0
    %v192 = vpop.f32.mrf.mxu0
    %v193 = vpop.f32.mrf.mxu0
    %194 = vdwg.mxu0
    %v195 = vmax.f32 %v190, 0.0
    %v196 = vpack.c.bf16 %v195, %v195
    %v197 = vld [vmem:[%s5] sm:$0xf]
    %v198 = vld [vmem:[%s5 + $0x4] sm:$0xf]
    %v199 = vld [vmem:[%s5 + $0x8] sm:$0xf]
    %v200 = vld [vmem:[%s5 + $0xc] sm:$0xf]
    %v201 = vld [vmem:[%s5 + $0x10] sm:$0xf]
    %v202 = vld [vmem:[%s5 + $0x14] sm:$0xf]
    %v203 = vld [vmem:[%s5 + $0x18] sm:$0xf]
    %v204 = vld [vmem:[%s5 + $0x1c] sm:$0xf]
    %v205 = vld [vmem:[%s6] sm:$0x1]
    %v207 = vlaneseq
    %v208 = vshrl.u32 %v207, 7
    %v209 = vsub.s32 0, %v208
    %v210 = vrot.slane %v205, %v209
    %v220 = vunpack.c.l.b16 %v197
    %v221 = vunpack.c.l.b16 %v198
    %v222 = vunpack.c.l.b16 %v199
    %v223 = vunpack.c.l.b16 %v200
    %v224 = vunpack.c.l.b16 %v201
    %v225 = vunpack.c.l.b16 %v202
    %v226 = vunpack.c.l.b16 %v203
    %v227 = vunpack.c.l.b16 %v204
    %v228 = vpack.c.b16 %v221, %v220
    %v229 = vpack.c.b16 %v223, %v222
    %v230 = vpack.c.b16 %v225, %v224
    %v231 = vpack.c.b16 %v227, %v226
    %v237 = vsel %vm151, %v196, 0
    %239 = vmatprep.subr.bf16.mxu0 0
    %240 = vmatpush1.bf16.msra.mxu0 0
    %241 = vmatprep.subr.bf16.mxu0 0
    %242 = vmatpush1.bf16.msra.mxu0 0
    %243 = vmatprep.subr.bf16.mxu0 0
    %244 = vmatpush1.bf16.msra.mxu0 0
    %245 = vmatprep.subr.bf16.mxu0 0
    %246 = vmatpush1.bf16.msra.mxu0 0
    %247 = vmatprep.subr.bf16.mxu0 0
    %248 = vmatpush1.bf16.msra.mxu0 %v231
    %249 = vmatprep.subr.bf16.mxu0 0
    %250 = vmatpush1.bf16.msra.mxu0 %v230
    %251 = vmatprep.subr.bf16.mxu0 0
    %252 = vmatpush1.bf16.msra.mxu0 %v229
    %253 = vmatprep.subr.bf16.mxu0 0
    %254 = vmatpush1.bf16.msra.mxu0 %v228
    %255 = vmatprep.subr.bf16.mxu0 0
    %256 = vmatpush2.bf16.msra.mxu0 0
    %257 = vmatprep.subr.bf16.mxu0 0
    %258 = vmatpush2.bf16.msra.mxu0 0
    %259 = vmatprep.subr.bf16.mxu0 0
    %260 = vmatpush2.bf16.msra.mxu0 0
    %261 = vmatprep.subr.bf16.mxu0 0
    %262 = vmatpush2.bf16.msra.mxu0 0
    %263 = vmatprep.subr.bf16.mxu0 0
    %264 = vmatpush2.bf16.msra.mxu0 0
    %265 = vmatprep.subr.bf16.mxu0 0
    %266 = vmatpush2.bf16.msra.mxu0 0
    %267 = vmatprep.subr.bf16.mxu0 0
    %268 = vmatpush2.bf16.msra.mxu0 0
    %269 = vmatprep.subr.bf16.mxu0 0
    %270 = vmatpush2.bf16.msra.mxu0 0
    %271 = vmatprep.mubr.bf16.mxu0 0
    %272 = vmatmul.mubr.bf16.gmra.mxu0 %v237
    %v273 = vpop.f32.mrf.mxu0
    %v274 = vadd.f32 %v210, %v273
    %v275 = vpop.f32.mrf.mxu0
    %v276 = vpop.f32.mrf.mxu0
    %v277 = vpop.f32.mrf.mxu0
    %278 = vdwg.mxu0
    %vm279 = vcmask 130048
    %280 = vst.msk [vmem:[#allocation5] sm:$0xff] %vm279, %v274
    // Predicated region
    $region34: #{tpu_custom_call.1} parent=1 // pred_check
      _
    $region35: #{tpu_custom_call.1} parent=1 // pred_check_branch
      %282 = sbr.rel (0) target = $region37
    $region36: #{tpu_custom_call.1} parent=1 // pred_region
      %s284 = ssub.s32 128, 128
      %285 = vsyncadd [#allocation4], %s284
      %s287 = sshll.u32 [#allocation5], 4
      %s288 = int_to_ptr.vmem [resolvable:$true] %s287
      %290 = dma.vmem_to_hbm [thread:$0]  %s288, 128, %s7, [#allocation4]
    $region37: #{tpu_custom_call.1} parent=1 // pred_fallthru
      _
    // Predicated region
    $region38: #{tpu_custom_call.1} parent=1 // pred_check
      _
    $region39: #{tpu_custom_call.1} parent=1 // pred_check_branch
      %292 = sbr.rel (0) target = $region41
    $region40: #{tpu_custom_call.1} parent=1 // pred_region
      %293 = dma.done [#allocation4], 128
    $region41: #{tpu_custom_call.1} parent=1 // pred_fallthru
      _
    %294 = vsyncpa [#allocation3], 1
    %295 = vsyncpa [#allocation4], 1

</llo_original>
